<compile_context>
chip_gen: v6e
topology: v6e:2x2x1
jax: 0.10.0
libtpu: 0.0.40
codegen_flags: <defaults>
</compile_context>

<pallas_src>
import functools

import jax
import jax.numpy as jnp
import numpy as np
from jax.experimental import pallas as pl
from jax.experimental.pallas import tpu as pltpu

# Synthetic tag vocabulary (stand-in for the project's ID2TAG / TAG2ID).
ID2TAG = ["O", "B-PER", "I-PER", "B-LOC", "I-LOC", "B-ORG", "I-ORG", "[END]"]
TAG2ID = {t: i for i, t in enumerate(ID2TAG)}
NUM_TAGS = len(ID2TAG)
IGNORE_INDEX = TAG2ID["[END]"]

T_PAD = 128                 # class axis padded to one full lane group
COUNT_LANE = T_PAD - 1      # always-zero NLL lane reused for the token count
NEG_BIG = -1.0e30           # padded-class bias (finite; exp underflows to exactly 0)
TN_MAX = 1024               # token-tile rows (multiple of 16 for bf16 sublane packing)

assert NUM_TAGS < COUNT_LANE  # count lane must never collide with a real class


def _round_up(x, m):
    return ((x + m - 1) // m) * m


def bert_ner_partial_kernel(enc_ref, w_ref, b_ref, tag_ref, out_ref, *,
                            n_tokens, block_rows):
    """Per-tile fused emission-FFN + masked cross-entropy partial sums.

    enc_ref : (TN, H)       bf16  -- tile of flattened encoder output (pipelined)
    w_ref   : (H, T_PAD)    bf16  -- emission weight, zero-padded classes (resident)
    b_ref   : (1, T_PAD)    f32   -- emission bias, -1e30 on padded classes (resident)
    tag_ref : (TN, 1)       int32 -- tile of gold tag ids (pipelined)
    out_ref : (1, 1, T_PAD) f32   -- lanes [0, NUM_TAGS): partial masked-NLL sums
                                     lane COUNT_LANE    : partial non-ignored count
    """
    # Native bf16 MXU matmul with f32 accumulation: (TN, H) @ (H, 128) -> (TN, 128).
    logits = jnp.dot(enc_ref[...], w_ref[...],
                     preferred_element_type=jnp.float32) + b_ref[...]

    # Numerically stable log-sum-exp (padded classes sit at ~-1e30 -> exp -> 0).
    m = jnp.max(logits, axis=-1, keepdims=True)                               # (TN, 1)
    lse = m + jnp.log(jnp.sum(jnp.exp(logits - m), axis=-1, keepdims=True))   # (TN, 1)

    tags = tag_ref[...]                                                        # (TN, 1)
    # Ragged-tail handling: rows past the true token count are undefined in VMEM
    # (no wrapper-side padding), so mask them out by global row index.
    row_ids = jax.lax.broadcasted_iota(jnp.int32, tags.shape, 0)               # (TN, 1)
    row_valid = (pl.program_id(0) * block_rows + row_ids) < n_tokens           # (TN, 1)
    keep = row_valid & (tags != IGNORE_INDEX)                                  # (TN, 1)

    cls_ids = jax.lax.broadcasted_iota(jnp.int32, logits.shape, 1)             # (TN, 128)
    # Fused one-hot + ignore/tail mask via a single select; jnp.where guarantees
    # NaN/garbage in masked-out rows contributes exactly 0.
    nll = jnp.where((cls_ids == tags) & keep, lse - logits, jnp.float32(0.0))  # (TN, 128)
    # Per-row "1" dropped into the count lane for kept rows (lane is never a gold tag).
    cnt = jnp.where((cls_ids == COUNT_LANE) & keep,
                    jnp.float32(1.0), jnp.float32(0.0))                        # (TN, 128)

    # Sublane-only reduction; output stays lane-dense.
    out_ref[...] = jnp.sum(nll + cnt, axis=0, keepdims=True).reshape(1, 1, T_PAD)


def bert_ner_loss(encoded, tag_ids, weight, bias, *, tile_rows=None):
    """encoded: (B, S, H); tag_ids: (B, S) int; weight: (H, NUM_TAGS); bias: (NUM_TAGS,)."""
    B, S, H = encoded.shape
    N = B * S

    # Class-axis padding: zero weight columns, large-negative bias on padded classes.
    w_p = jnp.zeros((H, T_PAD), jnp.bfloat16).at[:, :NUM_TAGS].set(
        weight.astype(jnp.bfloat16))
    b_p = jnp.full((1, T_PAD), NEG_BIG, jnp.float32).at[0, :NUM_TAGS].set(
        bias.astype(jnp.float32))

    # Activations stream in bf16 (intentional down-cast if f32 arrives); softmax/LSE
    # math stays f32 in-kernel.
    enc = encoded.reshape(N, H)
    if enc.dtype != jnp.bfloat16:
        enc = enc.astype(jnp.bfloat16)
    tags = tag_ids.reshape(N, 1).astype(jnp.int32)

    # Token-dimension tile: large (1024) for HBM-roofline efficiency, shrunk to a
    # multiple of 16 for tiny inputs.  No activation padding: the ragged last tile
    # is masked inside the kernel.
    if tile_rows is None:
        tile_rows = min(TN_MAX, _round_up(N, 16))
    TN = tile_rows
    num_blocks = pl.cdiv(N, TN)

    kernel = functools.partial(bert_ner_partial_kernel, n_tokens=N, block_rows=TN)

    partials = pl.pallas_call(
        kernel,
        out_shape=jax.ShapeDtypeStruct((num_blocks, 1, T_PAD), jnp.float32),
        grid=(num_blocks,),
        in_specs=[
            pl.BlockSpec((TN, H), lambda i: (i, 0)),        # encoder tile (pipelined)
            pl.BlockSpec((H, T_PAD), lambda i: (0, 0)),     # weight (resident)
            pl.BlockSpec((1, T_PAD), lambda i: (0, 0)),     # bias (resident)
            pl.BlockSpec((TN, 1), lambda i: (i, 0)),        # tag ids tile (pipelined)
        ],
        out_specs=pl.BlockSpec((1, 1, T_PAD), lambda i: (i, 0, 0)),
        compiler_params=pltpu.CompilerParams(
            # Independent partial sums -> megacore-shardable token axis.
            dimension_semantics=("parallel",),
            # Headroom above the scoped defaults (v5e 16 MiB / v6e-v7x 32 MiB) so TN
            # can be raised further; usage at TN=1024, H<=1024 is only ~6-7 MiB.
            vmem_limit_bytes=64 * 1024 * 1024,
        ),
        cost_estimate=pl.CostEstimate(
            flops=2 * N * H * T_PAD,
            transcendentals=N * T_PAD,
            bytes_accessed=(N * H * 2 + N * 4 + H * T_PAD * 2
                            + T_PAD * 4 + num_blocks * T_PAD * 4),
        ),
    )(enc, w_p, b_p, tags)

    # Tiny final reduction + single division (PyTorch CE 'mean' semantics; NaN if
    # every tag is [END], matching torch).  Count comes from the kernel's partials,
    # so tag_ids is never re-read from HBM.
    total = jnp.sum(partials[..., :NUM_TAGS])
    count = jnp.sum(partials[..., COUNT_LANE])
    return total / count


def _reference_loss(encoded, tag_ids, weight, bias):
    """Pure-JAX replication of the PyTorch forward for verification."""
    enc = encoded.astype(jnp.float32)
    w = weight.astype(jnp.float32)
    b = bias.astype(jnp.float32)
    logits = jnp.einsum("bsh,ht->bst", enc, w) + b                 # (B, S, T)
    logits = logits.reshape(-1, NUM_TAGS)
    tags = tag_ids.reshape(-1)
    logp = jax.nn.log_softmax(logits, axis=-1)
    nll = -jnp.take_along_axis(logp, tags[:, None], axis=-1)[:, 0]
    mask = (tags != IGNORE_INDEX).astype(jnp.float32)
    return jnp.sum(nll * mask) / jnp.sum(mask)


if __name__ == "__main__":
    # Small shapes consistent with the forward: batch=2, seq=8, hidden=32, tags=8.
    B, S, H = 2, 8, 32

    key = jax.random.PRNGKey(0)
    k_enc, k_w, k_b, k_tag = jax.random.split(key, 4)

    # `encoded` stands in for the BERT encoder's last_hidden_state (bf16 on TPU).
    encoded = jax.random.normal(k_enc, (B, S, H), dtype=jnp.float32).astype(jnp.bfloat16)

    # emission_ffn parameters (nn.Linear(hidden_size, len(ID2TAG))), stored (H, T)
    # and kept in bf16 so the kernel's MXU path is native bf16.
    weight = (0.02 * jax.random.normal(k_w, (H, NUM_TAGS), dtype=jnp.float32)).astype(jnp.bfloat16)
    bias = 0.01 * jax.random.normal(k_b, (NUM_TAGS,), dtype=jnp.float32)

    # Gold tags, including some '[END]' (= ignore_index) positions.
    tag_ids = jax.random.randint(k_tag, (B, S), 0, NUM_TAGS, dtype=jnp.int32)
    tag_ids = tag_ids.at[:, -2:].set(IGNORE_INDEX)  # pad tail with [END]

    loss = jax.block_until_ready(bert_ner_loss(encoded, tag_ids, weight, bias))
    ref = jax.block_until_ready(_reference_loss(encoded, tag_ids, weight, bias))
    assert np.allclose(np.asarray(loss), np.asarray(ref), rtol=1e-3, atol=1e-3), (loss, ref)

    # Ragged-tail case: N = 24 tokens with a forced 16-row tile -> 2 grid steps, the
    # last one partially out of bounds.  Exercises the in-kernel row-validity mask
    # (no wrapper-side jnp.pad of the activations).
    k2 = jax.random.PRNGKey(1)
    k_enc2, k_tag2 = jax.random.split(k2, 2)
    encoded2 = jax.random.normal(k_enc2, (3, 8, H), dtype=jnp.float32).astype(jnp.bfloat16)
    tag_ids2 = jax.random.randint(k_tag2, (3, 8), 0, NUM_TAGS, dtype=jnp.int32)
    loss2 = jax.block_until_ready(
        bert_ner_loss(encoded2, tag_ids2, weight, bias, tile_rows=16))
    ref2 = jax.block_until_ready(_reference_loss(encoded2, tag_ids2, weight, bias))
    assert np.allclose(np.asarray(loss2), np.asarray(ref2), rtol=1e-3, atol=1e-3), (loss2, ref2)

    print("KERNEL_OK")
</pallas_src>

<mosaic_0001>
module attributes {stable_mosaic.version = 11 : i64} {
  func.func @bert_ner_partial_kernel(%arg0: i32, %arg1: memref<16x32xbf16, #tpu.memory_space<vmem>>, %arg2: memref<32x128xbf16, #tpu.memory_space<vmem>>, %arg3: memref<1x128xf32, #tpu.memory_space<vmem>>, %arg4: memref<16x1xi32, #tpu.memory_space<vmem>>, %arg5: memref<1x1x128xf32, #tpu.memory_space<vmem>>) attributes {dimension_semantics = [#tpu.dimension_semantics<parallel>], iteration_bounds = array<i64: 1>, scalar_prefetch = 0 : i64, scratch_operands = 0 : i64, tpu.core_type = #tpu.core_type<tc>, window_params = [{transform_indices = @transform_0, window_bounds = array<i64: 16, 32>}, {pipeline_mode = #tpu.pipeline_mode<synchronous>, transform_indices = @transform_1, window_bounds = array<i64: 32, 128>}, {pipeline_mode = #tpu.pipeline_mode<synchronous>, transform_indices = @transform_2, window_bounds = array<i64: 1, 128>}, {transform_indices = @transform_3, window_bounds = array<i64: 16, 1>}, {transform_indices = @transform_4, window_bounds = array<i64: 1, 1, 128>}]} {
    %c0 = arith.constant 0 : index
    %c0_0 = arith.constant 0 : index
    %0 = vector.load %arg1[%c0, %c0_0] : memref<16x32xbf16, #tpu.memory_space<vmem>>, vector<16x32xbf16>
    %c0_1 = arith.constant 0 : index
    %c0_2 = arith.constant 0 : index
    %1 = vector.load %arg2[%c0_1, %c0_2] : memref<32x128xbf16, #tpu.memory_space<vmem>>, vector<32x128xbf16>
    %cst = arith.constant dense<0.000000e+00> : vector<16x128xf32>
    %2 = tpu.matmul %0, %1, %cst {dimension_numbers = #tpu.dot_dimension_numbers<[1], [0], [0], [1], [0, 0, 1, 1], [], []>} : vector<16x32xbf16>, vector<32x128xbf16>, vector<16x128xf32> -> vector<16x128xf32>
    %c0_3 = arith.constant 0 : index
    %c0_4 = arith.constant 0 : index
    %3 = vector.load %arg3[%c0_3, %c0_4] : memref<1x128xf32, #tpu.memory_space<vmem>>, vector<1x128xf32>
    %4 = vector.broadcast %3 : vector<1x128xf32> to vector<16x128xf32>
    %5 = arith.addf %2, %4 : vector<16x128xf32>
    %cst_5 = arith.constant dense<0xFF800000> : vector<16xf32>
    %6 = vector.multi_reduction <maximumf>, %5, %cst_5 [1] : vector<16x128xf32> to vector<16xf32>
    %7 = vector.shape_cast %6 : vector<16xf32> to vector<16x1xf32>
    %8 = vector.broadcast %7 : vector<16x1xf32> to vector<16x128xf32>
    %9 = arith.subf %5, %8 : vector<16x128xf32>
    %10 = math.exp %9 : vector<16x128xf32>
    %cst_6 = arith.constant dense<0.000000e+00> : vector<16xf32>
    %11 = vector.multi_reduction <add>, %10, %cst_6 [1] : vector<16x128xf32> to vector<16xf32>
    %12 = vector.shape_cast %11 : vector<16xf32> to vector<16x1xf32>
    %13 = math.log %12 : vector<16x1xf32>
    %14 = arith.addf %7, %13 : vector<16x1xf32>
    %c0_7 = arith.constant 0 : index
    %c0_8 = arith.constant 0 : index
    %15 = vector.load %arg4[%c0_7, %c0_8] : memref<16x1xi32, #tpu.memory_space<vmem>>, vector<16x1xi32>
    %16 = tpu.iota {dimensions = array<i32: 0>} : vector<16x1xi32>
    %c16_i32 = arith.constant 16 : i32
    %17 = arith.muli %arg0, %c16_i32 : i32
    %18 = vector.broadcast %17 : i32 to vector<16x1xi32>
    %19 = arith.addi %18, %16 : vector<16x1xi32>
    %c16_i32_9 = arith.constant 16 : i32
    %20 = vector.broadcast %c16_i32_9 : i32 to vector<16x1xi32>
    %21 = arith.cmpi slt, %19, %20 : vector<16x1xi32>
    %c7_i32 = arith.constant 7 : i32
    %22 = vector.broadcast %c7_i32 : i32 to vector<16x1xi32>
    %23 = arith.cmpi ne, %15, %22 : vector<16x1xi32>
    %24 = arith.andi %21, %23 : vector<16x1xi1>
    %25 = tpu.iota {dimensions = array<i32: 1>} : vector<16x128xi32>
    %26 = vector.broadcast %15 : vector<16x1xi32> to vector<16x128xi32>
    %27 = arith.cmpi eq, %25, %26 : vector<16x128xi32>
    %28 = vector.broadcast %24 : vector<16x1xi1> to vector<16x128xi1>
    %29 = arith.andi %27, %28 : vector<16x128xi1>
    %30 = vector.broadcast %14 : vector<16x1xf32> to vector<16x128xf32>
    %31 = arith.subf %30, %5 : vector<16x128xf32>
    %cst_10 = arith.constant 0.000000e+00 : f32
    %32 = vector.broadcast %cst_10 : f32 to vector<16x128xf32>
    %33 = arith.select %29, %31, %32 : vector<16x128xi1>, vector<16x128xf32>
    %c127_i32 = arith.constant 127 : i32
    %34 = vector.broadcast %c127_i32 : i32 to vector<16x128xi32>
    %35 = arith.cmpi eq, %25, %34 : vector<16x128xi32>
    %36 = vector.broadcast %24 : vector<16x1xi1> to vector<16x128xi1>
    %37 = arith.andi %35, %36 : vector<16x128xi1>
    %cst_11 = arith.constant 1.000000e+00 : f32
    %cst_12 = arith.constant 0.000000e+00 : f32
    %38 = vector.broadcast %cst_11 : f32 to vector<16x128xf32>
    %39 = vector.broadcast %cst_12 : f32 to vector<16x128xf32>
    %40 = arith.select %37, %38, %39 : vector<16x128xi1>, vector<16x128xf32>
    %41 = arith.addf %33, %40 : vector<16x128xf32>
    %cst_13 = arith.constant dense<0.000000e+00> : vector<128xf32>
    %42 = vector.multi_reduction <add>, %41, %cst_13 [0] : vector<16x128xf32> to vector<128xf32>
    %43 = vector.shape_cast %42 : vector<128xf32> to vector<1x128xf32>
    %44 = vector.shape_cast %43 : vector<1x128xf32> to vector<1x1x128xf32>
    %c0_14 = arith.constant 0 : index
    %c0_15 = arith.constant 0 : index
    %c0_16 = arith.constant 0 : index
    %45 = vector.load %arg5[%c0_14, %c0_15, %c0_16] : memref<1x1x128xf32, #tpu.memory_space<vmem>>, vector<1x1x128xf32>
    tpu.vector_store %arg5[%c0_14, %c0_15, %c0_16], %44 {strides = array<i32>} : memref<1x1x128xf32, #tpu.memory_space<vmem>>, vector<1x1x128xf32>,
    return
  }
  func.func @transform_0(%arg0: i32) -> (i32, i32) {
    %c0_i32 = arith.constant 0 : i32
    %c0_i32_0 = arith.constant 0 : i32
    return %arg0, %c0_i32 : i32, i32
  }
  func.func @transform_1(%arg0: i32) -> (i32, i32) {
    %c0_i32 = arith.constant 0 : i32
    %c0_i32_0 = arith.constant 0 : i32
    %c0_i32_1 = arith.constant 0 : i32
    return %c0_i32, %c0_i32_0 : i32, i32
  }
  func.func @transform_2(%arg0: i32) -> (i32, i32) {
    %c0_i32 = arith.constant 0 : i32
    %c0_i32_0 = arith.constant 0 : i32
    %c0_i32_1 = arith.constant 0 : i32
    return %c0_i32, %c0_i32_0 : i32, i32
  }
  func.func @transform_3(%arg0: i32) -> (i32, i32) {
    %c0_i32 = arith.constant 0 : i32
    %c0_i32_0 = arith.constant 0 : i32
    return %arg0, %c0_i32 : i32, i32
  }
  func.func @transform_4(%arg0: i32) -> (i32, i32, i32) {
    %c0_i32 = arith.constant 0 : i32
    %c0_i32_0 = arith.constant 0 : i32
    %c0_i32_1 = arith.constant 0 : i32
    return %arg0, %c0_i32, %c0_i32_0 : i32, i32, i32
  }
}

</mosaic_0001>

<llo_original>
// kernel: tpu_custom_call.1
$region0: #{tpu_custom_call.1}
  #allocation0 [shape = 'u32[]', space=smem, size = 0x4, offset = 0x4, fixed_abs, tag = 'smem constant byte address 0x4 - core index']
  #allocation1 [shape = 'u32[144,128]{1,0:T(1,128)}', space=vmem, size = 0x12000, scoped, tag = 'internal scratch']
  %s0 = inlined_call_operand.hbm [shape: bf16[16,32], index: 0, kind: input, shape index: {}]
  %s1 = inlined_call_operand.vmem [shape: bf16[32,128], index: 1, kind: input, shape index: {}]
  %s2 = inlined_call_operand.vmem [shape: f32[1,128], index: 2, kind: input, shape index: {}]
  %s3 = inlined_call_operand.vmem [shape: s32[16,1], index: 3, kind: input, shape index: {}]
  %s4 = inlined_call_operand.hbm [shape: f32[1,1,128], index: 4, kind: output, shape index: {}]
  %s5 = sld [smem:[#allocation0]]
  $region30: #{tpu_custom_call.1} parent=0
    _
  %s7 = ssub.s32 1, %s5
  %s8 = scalar_select 0, %s7, %s5
  $region1: #{tpu_custom_call.1} parent=0
    #allocation2 [shape = 'u8[4096]{0}', space=vmem, size = 0x1000, scoped, tag = 'input window, operand 0, single buffered']
    #allocation3 [shape = 's32[1]{0}', space=sflag, size = 0x4, scoped, tag = 'scoped memory for tpu_custom_call.1']
    #allocation4 [shape = 's32[1]{0}', space=sflag, size = 0x4, scoped, tag = 'scoped memory for tpu_custom_call.1']
    #allocation5 [shape = 'u8[512]{0}', space=vmem, size = 0x400, scoped, tag = 'output window, operand 0, single buffered']
    %9 = vsyncpa [#allocation3], 0
    %10 = vsyncpa [#allocation4], 0
    // Predicated region
    $region2: #{tpu_custom_call.1} parent=1 // pred_check
      _
    $region3: #{tpu_custom_call.1} parent=1 // pred_check_branch
      %12 = sbr.rel (0) target = $region5
    $region4: #{tpu_custom_call.1} parent=1 // pred_region
      %s14 = ssub.s32 128, 128
      %15 = vsyncadd [#allocation3], %s14
      %s16 = sshll.u32 [#allocation2], 4
      %s17 = int_to_ptr.vmem [resolvable:$true] %s16
      %22 = dma.hbm_to_vmem [thread:$0]  %s0, 128, %s17, [#allocation3], 64, 64, 4
    $region5: #{tpu_custom_call.1} parent=1 // pred_fallthru
      _
    // Predicated region
    $region6: #{tpu_custom_call.1} parent=1 // pred_check
      _
    $region7: #{tpu_custom_call.1} parent=1 // pred_check_branch
      %24 = sbr.rel (0) target = $region9
    $region8: #{tpu_custom_call.1} parent=1 // pred_region
      _
    $region9: #{tpu_custom_call.1} parent=1 // pred_fallthru
      _
    // Predicated region
    $region10: #{tpu_custom_call.1} parent=1 // pred_check
      _
    $region11: #{tpu_custom_call.1} parent=1 // pred_check_branch
      %26 = sbr.rel (0) target = $region13
    $region12: #{tpu_custom_call.1} parent=1 // pred_region
      _
    $region13: #{tpu_custom_call.1} parent=1 // pred_fallthru
      _
    // Predicated region
    $region14: #{tpu_custom_call.1} parent=1 // pred_check
      _
    $region15: #{tpu_custom_call.1} parent=1 // pred_check_branch
      %28 = sbr.rel (0) target = $region17
    $region16: #{tpu_custom_call.1} parent=1 // pred_region
      _
    $region17: #{tpu_custom_call.1} parent=1 // pred_fallthru
      _
    // Predicated region
    $region18: #{tpu_custom_call.1} parent=1 // pred_check
      _
    $region19: #{tpu_custom_call.1} parent=1 // pred_check_branch
      %30 = sbr.rel (0) target = $region21
    $region20: #{tpu_custom_call.1} parent=1 // pred_region
      %31 = dma.done [#allocation3], 128
    $region21: #{tpu_custom_call.1} parent=1 // pred_fallthru
      _
    %v33 = vld [vmem:[#allocation2] sm:$0xf]
    %v34 = vld [vmem:[#allocation2 + $0x4] sm:$0xf]
    %v35 = vld [vmem:[%s1] sm:$0xf]
    %v36 = vld [vmem:[%s1 + $0x4] sm:$0xf]
    %v37 = vld [vmem:[%s1 + $0x8] sm:$0xf]
    %v38 = vld [vmem:[%s1 + $0xc] sm:$0xf]
    %v39 = vld [vmem:[%s2] sm:$0x1]
    %v41 = vlaneseq
    %v42 = vshrl.u32 %v41, 7
    %v43 = vsub.s32 0, %v42
    %v44 = vrot.slane %v39, %v43
    %v48 = vunpack.c.l.b16 %v33
    %v49 = vunpack.c.l.b16 %v34
    %v50 = vpack.c.b16 %v49, %v48
    %v55 = vunpack.c.l.b16 %v35
    %v56 = vunpack.c.l.b16 %v36
    %v57 = vunpack.c.l.b16 %v37
    %v58 = vunpack.c.l.b16 %v38
    %v59 = vpack.c.b16 %v56, %v55
    %v60 = vpack.c.b16 %v58, %v57
    %vm63 = vcmask 261120
    %v65 = vsel %vm63, %v50, 0
    %67 = vmatprep.subr.bf16.mxu0 0
    %68 = vmatpush1.bf16.msra.mxu0 0
    %69 = vmatprep.subr.bf16.mxu0 0
    %70 = vmatpush1.bf16.msra.mxu0 0
    %71 = vmatprep.subr.bf16.mxu0 0
    %72 = vmatpush1.bf16.msra.mxu0 0
    %73 = vmatprep.subr.bf16.mxu0 0
    %74 = vmatpush1.bf16.msra.mxu0 0
    %75 = vmatprep.subr.bf16.mxu0 0
    %76 = vmatpush1.bf16.msra.mxu0 0
    %77 = vmatprep.subr.bf16.mxu0 0
    %78 = vmatpush1.bf16.msra.mxu0 0
    %79 = vmatprep.subr.bf16.mxu0 0
    %80 = vmatpush1.bf16.msra.mxu0 %v60
    %81 = vmatprep.subr.bf16.mxu0 0
    %82 = vmatpush1.bf16.msra.mxu0 %v59
    %83 = vmatprep.subr.bf16.mxu0 0
    %84 = vmatpush2.bf16.msra.mxu0 0
    %85 = vmatprep.subr.bf16.mxu0 0
    %86 = vmatpush2.bf16.msra.mxu0 0
    %87 = vmatprep.subr.bf16.mxu0 0
    %88 = vmatpush2.bf16.msra.mxu0 0
    %89 = vmatprep.subr.bf16.mxu0 0
    %90 = vmatpush2.bf16.msra.mxu0 0
    %91 = vmatprep.subr.bf16.mxu0 0
    %92 = vmatpush2.bf16.msra.mxu0 0
    %93 = vmatprep.subr.bf16.mxu0 0
    %94 = vmatpush2.bf16.msra.mxu0 0
    %95 = vmatprep.subr.bf16.mxu0 0
    %96 = vmatpush2.bf16.msra.mxu0 0
    %97 = vmatprep.subr.bf16.mxu0 0
    %98 = vmatpush2.bf16.msra.mxu0 0
    %99 = vmatprep.mubr.bf16.mxu0 0
    %100 = vmatmul.mubr.bf16.gmra.mxu0 %v65
    %v101 = vpop.f32.mrf.mxu0
    %v102 = vadd.f32 %v44, %v101
    %v103 = vpop.f32.mrf.mxu0
    %v104 = vpop.f32.mrf.mxu0
    %v105 = vadd.f32 %v44, %v104
    %v106 = vpop.f32.mrf.mxu0
    %107 = vdwg.mxu0
    %108 = vmax.xlane.f32.xlu0 %v102
    %v109 = vpop.xlane.xlu0 %108
    %110 = vmax.xlane.f32.xlu0 %v105
    %v111 = vpop.xlane.xlu0 %110
    %v112 = vsub.f32 %v102, %v109
    %v113 = vsub.f32 %v105, %v111
    %v114 = vmul.f32 %v112, 1.442695
    %v115 = vpow.pop %v114
    %v116 = vmul.f32 %v113, 1.442695
    %v117 = vpow.pop %v116
    %118 = vadd.xlane.f32.xlu0 %v115
    %v119 = vpop.xlane.xlu0 %118
    %120 = vadd.xlane.f32.xlu0 %v117
    %v121 = vpop.xlane.xlu0 %120
    %v122 = vlog2.pop %v119
    %v123 = vmul.f32 %v122, 0.6931472
    %v124 = vlog2.pop %v121
    %v125 = vmul.f32 %v124, 0.6931472
    %v126 = vadd.f32 %v109, %v123
    %v127 = vadd.f32 %v111, %v125
    %v128 = vld [vmem:[%s3] sm:$0xff]
    %v129 = vld [vmem:[%s3 + $0x8] sm:$0xff]
    %v130 = vlaneseq
    %v131 = vshrl.u32 %v130, 7
    %v132 = vadd.s32 %v131, 8
    %s133 = smul.u32 0, 16
    %v134 = vstv %s133
    %v135 = vadd.s32 %v134, %v131
    %v136 = vadd.s32 %v134, %v132
    %vm137 = vcmp.lt.s32.totalorder %v135, 16
    %vm138 = vcmp.lt.s32.totalorder %v136, 16
    %vm139 = vcmp.ne.s32.totalorder %v128, 7
    %vm140 = vcmp.ne.s32.totalorder %v129, 7
    %vm141 = vmand %vm137, %vm139
    %vm142 = vmand %vm138, %vm140
    %v143 = vlaneseq
    %v144 = vand.u32 %v143, 127
    %145 = vset.pattern.permute.xlu0 0
    %146 = vperm.xlu0 %145, %v128
    %v147 = vpop.permute.xlu0 %146
    %148 = vset.pattern.permute.xlu0 0
    %149 = vperm.xlu0 %148, %v129
    %v150 = vpop.permute.xlu0 %149
    %vm151 = vcmp.eq.s32.totalorder %v144, %v147
    %vm152 = vcmp.eq.s32.totalorder %v144, %v150
    %v153 = vsel %vm141, 1, 0
    %v154 = vsel %vm142, 1, 0
    %155 = vset.pattern.permute.xlu0 0
    %156 = vperm.xlu0 %155, %v153
    %v157 = vpop.permute.xlu0 %156
    %158 = vset.pattern.permute.xlu0 0
    %159 = vperm.xlu0 %158, %v154
    %v160 = vpop.permute.xlu0 %159
    %vm161 = vcmp.eq.s32.totalorder %v157, 1
    %vm162 = vcmp.eq.s32.totalorder %v160, 1
    %vm163 = vmand %vm151, %vm161
    %vm164 = vmand %vm152, %vm162
    %v165 = vsub.f32 %v126, %v102
    %v166 = vsub.f32 %v127, %v105
    %v167 = vsel %vm163, %v165, 0.0
    %v168 = vsel %vm164, %v166, 0.0
    %vm169 = vcmp.eq.s32.totalorder %v144, 127
    %vm170 = vmand %vm169, %vm161
    %vm171 = vmand %vm169, %vm162
    %v172 = vsel %vm170, 1.0, 0.0
    %v173 = vsel %vm171, 1.0, 0.0
    %v174 = vadd.f32 %v167, %v172
    %v175 = vadd.f32 %v168, %v173
    %v176 = vadd.f32 %v174, %v175
    %v177 = vrot.slane %v176, 4
    %v178 = vadd.f32 %v176, %v177
    %v179 = vrot.slane %v178, 2
    %v180 = vadd.f32 %v178, %v179
    %v181 = vrot.slane %v180, 1
    %v182 = vadd.f32 %v180, %v181
    %183 = vst [vmem:[#allocation5] sm:$0x1] %v182
    // Predicated region
    $region22: #{tpu_custom_call.1} parent=1 // pred_check
      _
    $region23: #{tpu_custom_call.1} parent=1 // pred_check_branch
      %185 = sbr.rel (0) target = $region25
    $region24: #{tpu_custom_call.1} parent=1 // pred_region
      %s187 = ssub.s32 16, 16
      %188 = vsyncadd [#allocation4], %s187
      %s190 = sshll.u32 [#allocation5], 4
      %s191 = int_to_ptr.vmem [resolvable:$true] %s190
      %193 = dma.vmem_to_hbm [thread:$0]  %s191, 16, %s4, [#allocation4]
    $region25: #{tpu_custom_call.1} parent=1 // pred_fallthru
      _
    // Predicated region
    $region26: #{tpu_custom_call.1} parent=1 // pred_check
      _
    $region27: #{tpu_custom_call.1} parent=1 // pred_check_branch
      %195 = sbr.rel (0) target = $region29
    $region28: #{tpu_custom_call.1} parent=1 // pred_region
      %196 = dma.done [#allocation4], 16
    $region29: #{tpu_custom_call.1} parent=1 // pred_fallthru
      _
    %197 = vsyncpa [#allocation3], 1
    %198 = vsyncpa [#allocation4], 1

</llo_original>
